<compile_context>
chip_gen: v7x
topology: tpu7x:2x2x1
jax: 0.10.0
libtpu: 0.0.40
codegen_flags: <defaults>
</compile_context>

<pallas_src>
import jax
import jax.numpy as jnp
from jax import lax
from jax.experimental import pallas as pl
from jax.experimental.pallas import tpu as pltpu


# ------------------------------ kernel ------------------------------------ #

def _fused_scale_net_kernel(x_ref, vecs_ref, mats_ref, out_ref):
    """Fused 4-layer chain for a (1,1,1,1) input with 3x3/s1/p1 convs.

    x_ref   : (1, 1)      f32 in SMEM  -- the scalar input value
    vecs_ref: (24, 16)    f32 in VMEM  -- packed vectors:
                rows 0:16, col 0 = b2 (as a column)
                row 16 = conv1 center-tap row (Cin=1 -> 16 lanes)
                row 17 = b1, row 18 = b3, row 19 = conv4 center-tap row
                row 20, col 0 = b4; remaining entries are zero padding
    mats_ref: (2, 16, 16) f32 in VMEM  -- [0] = w2_center^T (Cout, Cin)
                                          [1] = w3_center   (Cin, Cout)
    out_ref : (1, 1)      f32 in VMEM
    """
    x = x_ref[0, 0]                                   # scalar (sreg)

    # Static slices of the packed slabs (free views).
    b2_col = vecs_ref[0:16, 0:1]                      # (16, 1)
    w1_row = vecs_ref[16:17, :]                       # (1, 16)
    b1_row = vecs_ref[17:18, :]                       # (1, 16)
    b3_row = vecs_ref[18:19, :]                       # (1, 16)
    w4_row = vecs_ref[19:20, :]                       # (1, 16)
    b4 = vecs_ref[20:21, 0:1]                         # (1, 1)

    # conv1 (Cin=1): scalar broadcast multiply + bias + ReLU  -> (1,16) row.
    h1 = jnp.maximum(x * w1_row + b1_row, 0.0)

    # conv2 on VPU+XLU: row activation * w2^T, lane-reduce -> (16,1) column.
    w2t = mats_ref[0]                                 # (16,16) [out, in]
    y2 = jnp.sum(h1 * w2t, axis=-1, keepdims=True)    # (16, 1)
    h2 = jnp.maximum(y2 + b2_col, 0.0)                # (16, 1) column

    # conv3 on VPU+XLU: column activation * w3, sublane-reduce -> (1,16) row.
    w3 = mats_ref[1]                                  # (16,16) [in, out]
    y3 = jnp.sum(h2 * w3, axis=0, keepdims=True)      # (1, 16)
    h3 = jnp.maximum(y3 + b3_row, 0.0)                # (1, 16) row

    # conv4 (Cout=1): elementwise mul + lane reduce + bias.
    out_ref[...] = jnp.sum(h3 * w4_row, axis=-1, keepdims=True) + b4


# ------------------------------ wrapper ------------------------------------ #

def prepare_params(params):
    """One-time packing of the network parameters into two kernel slabs.

    Center-tap extraction, transposes and reshapes happen here (once per
    parameter update), NOT in the per-call forward path.
    Weights are HWIO; only tap [1,1] matters for a 1x1 spatial input.
    """
    w1c = params["w1"][1, 1]                 # (1, 16)   conv1 center tap
    w2c = params["w2"][1, 1]                 # (16, 16)  (Cin, Cout)
    w3c = params["w3"][1, 1]                 # (16, 16)  (Cin, Cout)
    w4c = params["w4"][1, 1]                 # (16, 1)   (Cin, Cout=1)
    b1, b2, b3, b4 = params["b1"], params["b2"], params["b3"], params["b4"]

    mats = jnp.stack([w2c.T, w3c]).astype(jnp.float32)      # (2, 16, 16)

    vecs = jnp.zeros((24, 16), jnp.float32)
    vecs = vecs.at[0:16, 0].set(b2.astype(jnp.float32))     # b2 as a column
    vecs = vecs.at[16, :].set(w1c[0].astype(jnp.float32))   # conv1 row
    vecs = vecs.at[17, :].set(b1.astype(jnp.float32))
    vecs = vecs.at[18, :].set(b3.astype(jnp.float32))
    vecs = vecs.at[19, :].set(w4c[:, 0].astype(jnp.float32))
    vecs = vecs.at[20, 0].set(b4[0].astype(jnp.float32))
    return {"mats": mats, "vecs": vecs}


def scale_net_forward(prepared, x=None):
    """Matches Scale_net.forward(ishalf=False): input is a (1,1,1,1) zero tensor.

    An explicit `x` of shape (1,1,1,1) may be supplied for testing; the kernel
    is exact for any value at that shape (only the center tap touches data).
    """
    # TODO(synk): ishalf=True (fp16 zero tensor) path not exercised; float32 only.
    if x is None:
        x = jnp.zeros((1, 1, 1, 1), jnp.float32)
    if x.shape != (1, 1, 1, 1):
        # Center-tap shortcut is only valid for 1x1 spatial input with 3x3/s1/p1.
        raise ValueError(f"scale_net_forward expects x of shape (1,1,1,1), got {x.shape}")

    x_smem = x.reshape(1, 1).astype(jnp.float32)

    out = pl.pallas_call(
        _fused_scale_net_kernel,
        out_shape=jax.ShapeDtypeStruct((1, 1), jnp.float32),
        in_specs=[
            pl.BlockSpec(memory_space=pltpu.MemorySpace.SMEM),   # x (scalar)
            pl.BlockSpec(memory_space=pltpu.MemorySpace.VMEM),   # vecs slab
            pl.BlockSpec(memory_space=pltpu.MemorySpace.VMEM),   # mats slab
        ],
        out_specs=pl.BlockSpec(memory_space=pltpu.MemorySpace.VMEM),
        cost_estimate=pl.CostEstimate(
            flops=1100, transcendentals=0, bytes_accessed=3600),
    )(x_smem, prepared["vecs"], prepared["mats"])

    return out.reshape(1, 1, 1, 1)                 # NCHW == NHWC here (all dims 1)


# ------------------------- params / reference ------------------------------ #

def init_params(key, internal_channel=16):
    """Deterministic synthetic init; PyTorch OIHW weights converted to HWIO."""
    keys = jax.random.split(key, 8)

    def mk_w(k, cout, cin):
        w_oihw = jax.random.normal(k, (cout, cin, 3, 3), jnp.float32) * 0.1
        return jnp.transpose(w_oihw, (2, 3, 1, 0))  # -> HWIO

    def mk_b(k, cout):
        return jax.random.normal(k, (cout,), jnp.float32) * 0.1

    c = internal_channel
    return {
        "w1": mk_w(keys[0], c, 1), "b1": mk_b(keys[1], c),
        "w2": mk_w(keys[2], c, c), "b2": mk_b(keys[3], c),
        "w3": mk_w(keys[4], c, c), "b3": mk_b(keys[5], c),
        "w4": mk_w(keys[6], 1, c), "b4": mk_b(keys[7], 1),
    }


def _reference_forward(params, x=None):
    """Pure-JAX reference (full 3x3 lax conv) for a correctness check."""
    dn = ("NHWC", "HWIO", "NHWC")

    def conv(x, w, b, relu):
        y = lax.conv_general_dilated(x, w, window_strides=(1, 1),
                                     padding=((1, 1), (1, 1)),
                                     dimension_numbers=dn) + b
        return jnp.maximum(y, 0.0) if relu else y

    if x is None:
        x = jnp.zeros((1, 1, 1, 1), jnp.float32)
    x = conv(x, params["w1"], params["b1"], True)
    x = conv(x, params["w2"], params["b2"], True)
    x = conv(x, params["w3"], params["b3"], True)
    x = conv(x, params["w4"], params["b4"], False)
    return x


if __name__ == "__main__":
    params = init_params(jax.random.PRNGKey(0))
    prepared = prepare_params(params)           # one-time wrapper prep (hoisted)

    # Module semantics: zero input tensor.
    out = scale_net_forward(prepared)
    out = jax.block_until_ready(out)
    assert out.shape == (1, 1, 1, 1), out.shape
    ref = _reference_forward(params)
    assert jnp.allclose(out, ref, atol=1e-5, rtol=1e-5), (out, ref)

    # Extra check with a non-zero (1,1,1,1) input so the conv1 weight path
    # (not just its bias) is actually exercised against the full-conv reference.
    x_test = jax.random.normal(jax.random.PRNGKey(1), (1, 1, 1, 1), jnp.float32)
    out2 = jax.block_until_ready(scale_net_forward(prepared, x_test))
    ref2 = _reference_forward(params, x_test)
    assert jnp.allclose(out2, ref2, atol=1e-5, rtol=1e-5), (out2, ref2)

    print("KERNEL_OK")
</pallas_src>

<mosaic_0001>
module attributes {stable_mosaic.version = 11 : i64} {
  func.func @_fused_scale_net_kernel(%arg0: memref<1x1xf32, #tpu.memory_space<smem>>, %arg1: memref<24x16xf32, #tpu.memory_space<vmem>>, %arg2: memref<2x16x16xf32, #tpu.memory_space<vmem>>, %arg3: memref<1x1xf32, #tpu.memory_space<vmem>>) attributes {dimension_semantics = [], scalar_prefetch = 0 : i64, scratch_operands = 0 : i64, tpu.core_type = #tpu.core_type<tc>} {
    %c0 = arith.constant 0 : index
    %c0_0 = arith.constant 0 : index
    %0 = memref.load %arg0[%c0, %c0_0] : memref<1x1xf32, #tpu.memory_space<smem>>
    %c0_1 = arith.constant 0 : index
    %c0_2 = arith.constant 0 : index
    %1 = vector.load %arg1[%c0_1, %c0_2] : memref<24x16xf32, #tpu.memory_space<vmem>>, vector<16x1xf32>
    %c16 = arith.constant 16 : index
    %c0_3 = arith.constant 0 : index
    %2 = vector.load %arg1[%c16, %c0_3] : memref<24x16xf32, #tpu.memory_space<vmem>>, vector<1x16xf32>
    %c17 = arith.constant 17 : index
    %c0_4 = arith.constant 0 : index
    %3 = vector.load %arg1[%c17, %c0_4] : memref<24x16xf32, #tpu.memory_space<vmem>>, vector<1x16xf32>
    %c18 = arith.constant 18 : index
    %c0_5 = arith.constant 0 : index
    %4 = vector.load %arg1[%c18, %c0_5] : memref<24x16xf32, #tpu.memory_space<vmem>>, vector<1x16xf32>
    %c19 = arith.constant 19 : index
    %c0_6 = arith.constant 0 : index
    %5 = vector.load %arg1[%c19, %c0_6] : memref<24x16xf32, #tpu.memory_space<vmem>>, vector<1x16xf32>
    %c20 = arith.constant 20 : index
    %c0_7 = arith.constant 0 : index
    %6 = vector.load %arg1[%c20, %c0_7] : memref<24x16xf32, #tpu.memory_space<vmem>>, vector<1x1xf32>
    %7 = vector.broadcast %0 : f32 to vector<1x16xf32>
    %8 = arith.mulf %7, %2 : vector<1x16xf32>
    %9 = arith.addf %8, %3 : vector<1x16xf32>
    %cst = arith.constant 0.000000e+00 : f32
    %10 = vector.broadcast %cst : f32 to vector<1x16xf32>
    %11 = arith.maximumf %9, %10 : vector<1x16xf32>
    %c0_8 = arith.constant 0 : index
    %c0_9 = arith.constant 0 : index
    %c0_10 = arith.constant 0 : index
    %12 = vector.load %arg2[%c0_8, %c0_9, %c0_10] : memref<2x16x16xf32, #tpu.memory_space<vmem>>, vector<1x16x16xf32>
    %13 = vector.shape_cast %12 : vector<1x16x16xf32> to vector<16x16xf32>
    %14 = vector.broadcast %11 : vector<1x16xf32> to vector<16x16xf32>
    %15 = arith.mulf %14, %13 : vector<16x16xf32>
    %cst_11 = arith.constant dense<0.000000e+00> : vector<16xf32>
    %16 = vector.multi_reduction <add>, %15, %cst_11 [1] : vector<16x16xf32> to vector<16xf32>
    %17 = vector.shape_cast %16 : vector<16xf32> to vector<16x1xf32>
    %18 = arith.addf %17, %1 : vector<16x1xf32>
    %cst_12 = arith.constant 0.000000e+00 : f32
    %19 = vector.broadcast %cst_12 : f32 to vector<16x1xf32>
    %20 = arith.maximumf %18, %19 : vector<16x1xf32>
    %c1 = arith.constant 1 : index
    %c0_13 = arith.constant 0 : index
    %c0_14 = arith.constant 0 : index
    %21 = vector.load %arg2[%c1, %c0_13, %c0_14] : memref<2x16x16xf32, #tpu.memory_space<vmem>>, vector<1x16x16xf32>
    %22 = vector.shape_cast %21 : vector<1x16x16xf32> to vector<16x16xf32>
    %23 = vector.broadcast %20 : vector<16x1xf32> to vector<16x16xf32>
    %24 = arith.mulf %23, %22 : vector<16x16xf32>
    %cst_15 = arith.constant dense<0.000000e+00> : vector<16xf32>
    %25 = vector.multi_reduction <add>, %24, %cst_15 [0] : vector<16x16xf32> to vector<16xf32>
    %26 = vector.shape_cast %25 : vector<16xf32> to vector<1x16xf32>
    %27 = arith.addf %26, %4 : vector<1x16xf32>
    %cst_16 = arith.constant 0.000000e+00 : f32
    %28 = vector.broadcast %cst_16 : f32 to vector<1x16xf32>
    %29 = arith.maximumf %27, %28 : vector<1x16xf32>
    %30 = arith.mulf %29, %5 : vector<1x16xf32>
    %cst_17 = arith.constant dense<0.000000e+00> : vector<1xf32>
    %31 = vector.multi_reduction <add>, %30, %cst_17 [1] : vector<1x16xf32> to vector<1xf32>
    %32 = vector.shape_cast %31 : vector<1xf32> to vector<1x1xf32>
    %33 = arith.addf %32, %6 : vector<1x1xf32>
    %c0_18 = arith.constant 0 : index
    %c0_19 = arith.constant 0 : index
    %34 = vector.load %arg3[%c0_18, %c0_19] : memref<1x1xf32, #tpu.memory_space<vmem>>, vector<1x1xf32>
    tpu.vector_store %arg3[%c0_18, %c0_19], %33 {strides = array<i32>} : memref<1x1xf32, #tpu.memory_space<vmem>>, vector<1x1xf32>,
    return
  }
}

</mosaic_0001>

<llo_original>
// kernel: tpu_custom_call.1
$region0: #{tpu_custom_call.1}
  #allocation0 [shape = 'u32[]', space=smem, size = 0x4, offset = 0x4, fixed_abs, tag = 'smem constant byte address 0x4 - core index']
  #allocation1 [shape = 'u32[144,128]{1,0:T(1,128)}', space=vmem, size = 0x12000, scoped, tag = 'internal scratch']
  #allocation2 [shape = 'f32[1,1]{1,0:T(1,128)S(6)}', space=smem, size = 0x200, scoped, tag = 'scoped memory for tpu_custom_call.1']
  %s0 = inlined_call_operand.<no memory space> [shape: f32[1,1], index: 0, kind: input, shape index: {}]
  %s1 = inlined_call_operand.vmem [shape: f32[24,16], index: 1, kind: input, shape index: {}]
  %s2 = inlined_call_operand.vmem [shape: f32[2,16,16], index: 2, kind: input, shape index: {}]
  %s3 = inlined_call_operand.hbm [shape: f32[1,1], index: 3, kind: output, shape index: {}]
  %s4 = sld [smem:[#allocation0]]
  $region22: #{tpu_custom_call.1} parent=0
    _
  %s6 = ssub.s32 1, %s4
  %s7 = scalar_select 0, %s6, %s4
  %8 = sst [smem:[#allocation2]] %s0
  $region1: #{tpu_custom_call.1} parent=0
    #allocation3 [shape = 'u8[512]{0}', space=vmem, size = 0x400, scoped, tag = 'output window, operand 0, single buffered']
    #allocation4 [shape = 's32[1]{0}', space=sflag, size = 0x4, scoped, tag = 'scoped memory for tpu_custom_call.1']
    %9 = vsyncpa [#allocation4], 0
    // Predicated region
    $region2: #{tpu_custom_call.1} parent=1 // pred_check
      _
    $region3: #{tpu_custom_call.1} parent=1 // pred_check_branch
      %11 = sbr.rel (0) target = $region5
    $region4: #{tpu_custom_call.1} parent=1 // pred_region
      _
    $region5: #{tpu_custom_call.1} parent=1 // pred_fallthru
      _
    // Predicated region
    $region6: #{tpu_custom_call.1} parent=1 // pred_check
      _
    $region7: #{tpu_custom_call.1} parent=1 // pred_check_branch
      %13 = sbr.rel (0) target = $region9
    $region8: #{tpu_custom_call.1} parent=1 // pred_region
      _
    $region9: #{tpu_custom_call.1} parent=1 // pred_fallthru
      _
    // Predicated region
    $region10: #{tpu_custom_call.1} parent=1 // pred_check
      _
    $region11: #{tpu_custom_call.1} parent=1 // pred_check_branch
      %15 = sbr.rel (0) target = $region13
    $region12: #{tpu_custom_call.1} parent=1 // pred_region
      _
    $region13: #{tpu_custom_call.1} parent=1 // pred_fallthru
      _
    %s16 = sld [smem:[#allocation2]]
    %v17 = vld [vmem:[%s1] sm:$0xff]
    %v18 = vld [vmem:[%s1 + $0x8] sm:$0xff]
    %v19 = vld [vmem:[%s1 + $0x10] sm:$0x1]
    %v20 = vld [vmem:[%s1 + $0x11] sm:$0x1]
    %v21 = vld [vmem:[%s1 + $0x12] sm:$0x1]
    %v22 = vld [vmem:[%s1 + $0x13] sm:$0x1]
    %v23 = vld [vmem:[%s1 + $0x14] sm:$0x1]
    %v24 = vstv %s16
    %v25 = vmul.f32 %v24, %v19
    %v26 = vadd.f32 %v25, %v20
    %v27 = vmax.f32 %v26, 0.0
    %v28 = vld [vmem:[%s2] sm:$0xff]
    %v29 = vld [vmem:[%s2 + $0x8] sm:$0xff]
    %v30 = vlaneseq
    %v31 = vshrl.u32 %v30, 7
    %v32 = vsub.s32 0, %v31
    %v33 = vrot.slane %v27, %v32
    %v34 = vmul.f32 %v33, %v28
    %v35 = vmul.f32 %v33, %v29
    %vm36 = vcmask 130048
    %v37 = vsel %vm36, %v34, 0.0
    %38 = vadd.xlane.f32.xlu0 %v37
    %v39 = vpop.xlane.xlu0 %38
    %v40 = vsel %vm36, %v35, 0.0
    %41 = vadd.xlane.f32.xlu0 %v40
    %v42 = vpop.xlane.xlu0 %41
    %v43 = vadd.f32 %v39, %v17
    %v44 = vadd.f32 %v42, %v18
    %v45 = vmax.f32 %v43, 0.0
    %v46 = vmax.f32 %v44, 0.0
    %s47 = scalar_lea.vmem %s2, 16
    %v48 = vld [vmem:[%s47] sm:$0xff]
    %v49 = vld [vmem:[%s47 + $0x8] sm:$0xff]
    %51 = vset.pattern.permute.xlu0 0
    %52 = vperm.xlu0 %51, %v45
    %v53 = vpop.permute.xlu0 %52
    %56 = vset.pattern.permute.xlu0 0
    %57 = vperm.xlu0 %56, %v46
    %v58 = vpop.permute.xlu0 %57
    %v60 = vmul.f32 %v53, %v48
    %v61 = vmul.f32 %v58, %v49
    %v62 = vsel %vm36, %v60, 0.0
    %v63 = vsel %vm36, %v61, 0.0
    %v64 = vadd.f32 %v62, %v63
    %v65 = vrot.slane %v64, 4
    %v66 = vadd.f32 %v64, %v65
    %v67 = vrot.slane %v66, 2
    %v68 = vadd.f32 %v66, %v67
    %v69 = vrot.slane %v68, 1
    %v70 = vadd.f32 %v68, %v69
    %v71 = vadd.f32 %v70, %v21
    %v72 = vmax.f32 %v71, 0.0
    %v73 = vmul.f32 %v72, %v22
    %vm74 = vcmask 122880
    %v75 = vsel %vm74, %v73, 0.0
    %76 = vadd.xlane.f32.xlu0 %v75
    %v77 = vpop.xlane.xlu0 %76
    %v78 = vadd.f32 %v77, %v23
    %vm79 = vcmask 0
    %80 = vst.msk [vmem:[#allocation3] sm:$0x1] %vm79, %v78
    // Predicated region
    $region14: #{tpu_custom_call.1} parent=1 // pred_check
      _
    $region15: #{tpu_custom_call.1} parent=1 // pred_check_branch
      %82 = sbr.rel (0) target = $region17
    $region16: #{tpu_custom_call.1} parent=1 // pred_region
      %s84 = ssub.s32 16, 16
      %85 = vsyncadd [#allocation4], %s84
      %s87 = sshll.u32 [#allocation3], 4
      %s88 = int_to_ptr.vmem [resolvable:$true] %s87
      %90 = dma.vmem_to_hbm [thread:$0]  %s88, 16, %s3, [#allocation4]
    $region17: #{tpu_custom_call.1} parent=1 // pred_fallthru
      _
    // Predicated region
    $region18: #{tpu_custom_call.1} parent=1 // pred_check
      _
    $region19: #{tpu_custom_call.1} parent=1 // pred_check_branch
      %92 = sbr.rel (0) target = $region21
    $region20: #{tpu_custom_call.1} parent=1 // pred_region
      %93 = dma.done [#allocation4], 16
    $region21: #{tpu_custom_call.1} parent=1 // pred_fallthru
      _
    %94 = vsyncpa [#allocation4], 1

</llo_original>
